<compile_context>
chip_gen: v7x
topology: tpu7x:2x2x1
jax: 0.10.0
libtpu: 0.0.40
codegen_flags: <defaults>
</compile_context>

<pallas_src>
import jax
import jax.numpy as jnp
import numpy as np
from jax.experimental import pallas as pl
from jax.experimental.pallas import tpu as pltpu


def _round_up(x, m):
    return ((x + m - 1) // m) * m


def _pick_tile(dim, target, align):
    """Choose a tile size (multiple of `align`).

    Small dims: the whole (aligned) dim as a single tile.  Large dims: search
    multiples of `align` in [target/2, 2*target] and pick the one minimizing
    zero-padding waste (ties -> largest tile, for arithmetic intensity).
    """
    dim_a = _round_up(dim, align)
    if dim_a <= target:
        return dim_a
    best_tile, best_waste = align, None
    t = max(align, target // 2)
    while t <= 2 * target:
        waste = _round_up(dim_a, t) - dim_a
        if (best_waste is None or waste < best_waste
                or (waste == best_waste and t > best_tile)):
            best_tile, best_waste = t, waste
        t += align
    return best_tile


def _eq_linear_kernel(x_ref, w_ref, b_ref, o_ref):
    k = pl.program_id(2)
    is_last = k == pl.num_programs(2) - 1

    # bf16 MXU operands (x and W are both pre-cast), f32 accumulation directly
    # into the resident output tile (same (i, j) block across the K axis).
    contrib = jnp.dot(x_ref[...], w_ref[...],
                      preferred_element_type=jnp.float32)
    # Fold the bias add into the last K step -> no separate finalize pass.
    contrib = contrib + jnp.where(is_last, b_ref[...],
                                  jnp.zeros_like(b_ref[...]))

    @pl.when(k == 0)
    def _first():
        o_ref[...] = contrib

    @pl.when(k > 0)
    def _accumulate():
        o_ref[...] = o_ref[...] + contrib


class EqualizedLinear:
    """JAX/Pallas port of the PyTorch `equalized_linear` module (forward)."""

    # Tile targets: 512 on all three dims (big lane-dense tiles, high
    # arithmetic intensity; adaptive picker may choose 256..1024).
    TM, TN, TK = 512, 512, 512

    def __init__(self, c_in, c_out, key, a=1.0, reshape=False):
        self.c_in = int(c_in)
        self.c_out = int(c_out)
        self.reshape = reshape
        if reshape:
            assert self.c_out % 16 == 0, "reshape=True requires c_out % 16 == 0"
            self.channels = self.c_out // 16
            bias_len = self.channels
        else:
            bias_len = self.c_out

        # nn.Linear weight shape (c_out, c_in); normal() init -> std normal.
        self.weight = jax.random.normal(
            key, (self.c_out, self.c_in), dtype=jnp.float32)
        fan_in = self.c_in                       # 2-D weight -> size(1)
        gain = (2.0 / (1.0 + a ** 2)) ** 0.5
        self.scale = gain / fan_in ** 0.5
        self.bias = jnp.zeros((bias_len,), dtype=jnp.float32)

        # Static tile sizes / padded extents for the (c_in, c_out) dims.
        self._tk = _pick_tile(self.c_in, self.TK, 128)
        self._tn = _pick_tile(self.c_out, self.TN, 128)
        self._kp = _round_up(self.c_in, self._tk)
        self._np = _round_up(self.c_out, self._tn)

        self._refresh_params()

    def _refresh_params(self):
        # Pre-scaled, pre-transposed, bf16, zero-padded (Kp, Np) weight.
        w_t = (self.weight.T * self.scale).astype(jnp.bfloat16)
        self._w_padded = (
            jnp.zeros((self._kp, self._np), jnp.bfloat16)
            .at[:self.c_in, :self.c_out].set(w_t))
        # Padded bias row (1, Np); repeated 16x per channel for reshape=True
        # (flat column index // 16 == channel index of the (-1, C, 4, 4) view).
        b = jnp.repeat(self.bias, 16) if self.reshape else self.bias
        self._b_padded = (
            jnp.zeros((1, self._np), jnp.float32)
            .at[0, :self.c_out].set(b))

    def set_bias(self, bias):
        self.bias = jnp.asarray(bias, jnp.float32)
        self._refresh_params()

    def __call__(self, x):
        n, c_in = x.shape
        assert c_in == self.c_in

        tm = _pick_tile(n, self.TM, 16)          # 16: bf16 sublane packing
        mp = _round_up(n, tm)
        tn = self._tn

        # v7x has 2 TensorCores sharded over the "parallel" grid axes; if the
        # whole problem is a single (i, j) block and it is big enough to be
        # worth splitting, halve a parallel tile so both cores get work.
        if (mp // tm) * (self._np // tn) == 1:
            if tm >= 256 and tm % 32 == 0:
                tm //= 2
            elif tn >= 256 and tn % 256 == 0:
                tn //= 2
        grid_m = mp // tm
        grid_n = self._np // tn
        grid_k = self._kp // self._tk

        # x as bf16: cast folded into the zero-pad (one pass); pad skipped
        # entirely when the shape already matches the padded extents.
        if (mp, self._kp) != (n, c_in):
            xp = (jnp.zeros((mp, self._kp), jnp.bfloat16)
                  .at[:n, :c_in].set(x.astype(jnp.bfloat16)))
        else:
            xp = x.astype(jnp.bfloat16)

        cost = pl.CostEstimate(
            flops=2 * mp * self._kp * self._np,
            transcendentals=0,
            bytes_accessed=(mp * self._kp * 2 * grid_n          # x, re-read per N block
                            + self._kp * self._np * 2 * grid_m  # W, re-read per M block
                            + self._np * 4 * grid_m             # bias row
                            + mp * self._np * 4),               # output (written once)
        )

        y = pl.pallas_call(
            _eq_linear_kernel,
            out_shape=jax.ShapeDtypeStruct((mp, self._np), jnp.float32),
            grid_spec=pltpu.PrefetchScalarGridSpec(
                num_scalar_prefetch=0,
                grid=(grid_m, grid_n, grid_k),
                in_specs=[
                    pl.BlockSpec((tm, self._tk), lambda i, j, k: (i, k)),
                    pl.BlockSpec((self._tk, tn), lambda i, j, k: (k, j)),
                    pl.BlockSpec((1, tn), lambda i, j, k: (0, j)),
                ],
                out_specs=pl.BlockSpec((tm, tn), lambda i, j, k: (i, j)),
            ),
            compiler_params=pltpu.CompilerParams(
                dimension_semantics=("parallel", "parallel", "arbitrary"),
                vmem_limit_bytes=32 * 1024 * 1024),
            cost_estimate=cost,
        )(xp, self._w_padded, self._b_padded)

        y = y[:n, :self.c_out]
        if self.reshape:
            y = y.reshape(-1, self.channels, 4, 4)
        return y


# ----------------------------- references -----------------------------------

def _reference_f32(x, mod):
    """Exact PyTorch-semantics reference in f32."""
    y = jnp.dot(x * mod.scale, mod.weight.T)
    if mod.reshape:
        y = y.reshape(-1, mod.channels, 4, 4) + mod.bias.reshape(1, -1, 1, 1)
    else:
        y = y + mod.bias.reshape(1, -1)
    return y


def _reference_bf16(x, mod):
    """Same math at the kernel's precision (bf16 operands, f32 accumulate)."""
    w_bf = (mod.weight.T * mod.scale).astype(jnp.bfloat16)
    y = jnp.dot(x.astype(jnp.bfloat16), w_bf,
                preferred_element_type=jnp.float32)
    if mod.reshape:
        y = y.reshape(-1, mod.channels, 4, 4) + mod.bias.reshape(1, -1, 1, 1)
    else:
        y = y + mod.bias.reshape(1, -1)
    return y


if __name__ == "__main__":
    key = jax.random.PRNGKey(0)
    kw1, kw2, kx1, kx2, kb1, kb2 = jax.random.split(key, 6)

    # --- Test 1: reshape=False, small shapes (batch=8, c_in=32, c_out=48) ---
    batch, c_in, c_out = 8, 32, 48
    mod = EqualizedLinear(c_in, c_out, key=kw1, a=1.0, reshape=False)
    mod.set_bias(jax.random.normal(kb1, (c_out,), dtype=jnp.float32))
    x = jax.random.normal(kx1, (batch, c_in), dtype=jnp.float32)

    y = mod(x)
    jax.block_until_ready(y)
    assert y.shape == (batch, c_out)
    np.testing.assert_allclose(np.asarray(y), np.asarray(_reference_bf16(x, mod)),
                               rtol=1e-4, atol=1e-4)
    np.testing.assert_allclose(np.asarray(y), np.asarray(_reference_f32(x, mod)),
                               rtol=5e-2, atol=5e-2)

    # --- Test 2: reshape=True (c_out=64 -> channels=4, output (-1, 4, 4, 4)) ---
    batch2, c_in2, c_out2 = 8, 32, 64
    mod2 = EqualizedLinear(c_in2, c_out2, key=kw2, a=1.0, reshape=True)
    mod2.set_bias(jax.random.normal(kb2, (c_out2 // 16,), dtype=jnp.float32))
    x2 = jax.random.normal(kx2, (batch2, c_in2), dtype=jnp.float32)

    y2 = mod2(x2)
    jax.block_until_ready(y2)
    assert y2.shape == (batch2, c_out2 // 16, 4, 4)
    np.testing.assert_allclose(np.asarray(y2), np.asarray(_reference_bf16(x2, mod2)),
                               rtol=1e-4, atol=1e-4)
    np.testing.assert_allclose(np.asarray(y2), np.asarray(_reference_f32(x2, mod2)),
                               rtol=5e-2, atol=5e-2)

    print("KERNEL_OK")
</pallas_src>

<mosaic_0001>
module attributes {stable_mosaic.version = 11 : i64} {
  func.func @_eq_linear_kernel(%arg0: i32, %arg1: i32, %arg2: i32, %arg3: memref<16x128xbf16, #tpu.memory_space<vmem>>, %arg4: memref<128x128xbf16, #tpu.memory_space<vmem>>, %arg5: memref<1x128xf32, #tpu.memory_space<vmem>>, %arg6: memref<16x128xf32, #tpu.memory_space<vmem>>) attributes {dimension_semantics = [#tpu.dimension_semantics<parallel>, #tpu.dimension_semantics<parallel>, #tpu.dimension_semantics<arbitrary>], iteration_bounds = array<i64: 1, 1, 1>, scalar_prefetch = 0 : i64, scratch_operands = 0 : i64, tpu.core_type = #tpu.core_type<tc>, window_params = [{transform_indices = @transform_0, window_bounds = array<i64: 16, 128>}, {transform_indices = @transform_1, window_bounds = array<i64: 128, 128>}, {transform_indices = @transform_2, window_bounds = array<i64: 1, 128>}, {transform_indices = @transform_3, window_bounds = array<i64: 16, 128>}]} {
    %c0_i32 = arith.constant 0 : i32
    %0 = arith.cmpi eq, %arg2, %c0_i32 : i32
    %c0 = arith.constant 0 : index
    %c0_0 = arith.constant 0 : index
    %1 = vector.load %arg3[%c0, %c0_0] : memref<16x128xbf16, #tpu.memory_space<vmem>>, vector<16x128xbf16>
    %c0_1 = arith.constant 0 : index
    %c0_2 = arith.constant 0 : index
    %2 = vector.load %arg4[%c0_1, %c0_2] : memref<128x128xbf16, #tpu.memory_space<vmem>>, vector<128x128xbf16>
    %cst = arith.constant dense<0.000000e+00> : vector<16x128xf32>
    %3 = tpu.matmul %1, %2, %cst {dimension_numbers = #tpu.dot_dimension_numbers<[1], [0], [0], [1], [0, 0, 1, 1], [], []>} : vector<16x128xbf16>, vector<128x128xbf16>, vector<16x128xf32> -> vector<16x128xf32>
    %c0_3 = arith.constant 0 : index
    %c0_4 = arith.constant 0 : index
    %4 = vector.load %arg5[%c0_3, %c0_4] : memref<1x128xf32, #tpu.memory_space<vmem>>, vector<1x128xf32>
    %cst_5 = arith.constant 0.000000e+00 : f32
    %5 = vector.broadcast %cst_5 : f32 to vector<1x128xf32>
    %6 = arith.select %0, %4, %5 : vector<1x128xf32>
    %7 = vector.broadcast %6 : vector<1x128xf32> to vector<16x128xf32>
    %8 = arith.addf %3, %7 : vector<16x128xf32>
    %c0_i32_6 = arith.constant 0 : i32
    %9 = arith.cmpi eq, %arg2, %c0_i32_6 : i32
    %10 = arith.extui %9 : i1 to i32
    %c0_i32_7 = arith.constant 0 : i32
    %11 = arith.cmpi ne, %10, %c0_i32_7 : i32
    scf.if %11 {
      %c0_10 = arith.constant 0 : index
      %c0_11 = arith.constant 0 : index
      %15 = vector.load %arg6[%c0_10, %c0_11] : memref<16x128xf32, #tpu.memory_space<vmem>>, vector<16x128xf32>
      tpu.vector_store %arg6[%c0_10, %c0_11], %8 {strides = array<i32>} : memref<16x128xf32, #tpu.memory_space<vmem>>, vector<16x128xf32>,
    } else {
    }
    %c0_i32_8 = arith.constant 0 : i32
    %12 = arith.cmpi sgt, %arg2, %c0_i32_8 : i32
    %13 = arith.extui %12 : i1 to i32
    %c0_i32_9 = arith.constant 0 : i32
    %14 = arith.cmpi ne, %13, %c0_i32_9 : i32
    scf.if %14 {
      %c0_10 = arith.constant 0 : index
      %c0_11 = arith.constant 0 : index
      %15 = vector.load %arg6[%c0_10, %c0_11] : memref<16x128xf32, #tpu.memory_space<vmem>>, vector<16x128xf32>
      %16 = arith.addf %15, %8 : vector<16x128xf32>
      %c0_12 = arith.constant 0 : index
      %c0_13 = arith.constant 0 : index
      %17 = vector.load %arg6[%c0_12, %c0_13] : memref<16x128xf32, #tpu.memory_space<vmem>>, vector<16x128xf32>
      tpu.vector_store %arg6[%c0_12, %c0_13], %16 {strides = array<i32>} : memref<16x128xf32, #tpu.memory_space<vmem>>, vector<16x128xf32>,
    } else {
    }
    return
  }
  func.func @transform_0(%arg0: i32, %arg1: i32, %arg2: i32) -> (i32, i32) {
    %c0_i32 = arith.constant 0 : i32
    return %arg0, %arg2 : i32, i32
  }
  func.func @transform_1(%arg0: i32, %arg1: i32, %arg2: i32) -> (i32, i32) {
    %c0_i32 = arith.constant 0 : i32
    return %arg2, %arg1 : i32, i32
  }
  func.func @transform_2(%arg0: i32, %arg1: i32, %arg2: i32) -> (i32, i32) {
    %c0_i32 = arith.constant 0 : i32
    %c0_i32_0 = arith.constant 0 : i32
    return %c0_i32, %arg1 : i32, i32
  }
  func.func @transform_3(%arg0: i32, %arg1: i32, %arg2: i32) -> (i32, i32) {
    %c0_i32 = arith.constant 0 : i32
    return %arg0, %arg1 : i32, i32
  }
}

</mosaic_0001>

<llo_original>
// kernel: tpu_custom_call.1
$region0: #{tpu_custom_call.1}
  #allocation0 [shape = 'u32[]', space=smem, size = 0x4, offset = 0x4, fixed_abs, tag = 'smem constant byte address 0x4 - core index']
  #allocation1 [shape = 'u32[144,128]{1,0:T(1,128)}', space=vmem, size = 0x12000, scoped, tag = 'internal scratch']
  %s0 = inlined_call_operand.hbm [shape: bf16[16,128], index: 0, kind: input, shape index: {}]
  %s1 = inlined_call_operand.hbm [shape: bf16[128,128], index: 1, kind: input, shape index: {}]
  %s2 = inlined_call_operand.vmem [shape: f32[1,128], index: 2, kind: input, shape index: {}]
  %s3 = inlined_call_operand.hbm [shape: f32[16,128], index: 3, kind: output, shape index: {}]
  %s4 = sld [smem:[#allocation0]]
  $region38: #{tpu_custom_call.1} parent=0
    _
  %s6 = ssub.s32 1, %s4
  %s7 = scalar_select 0, %s6, %s4
  $region1: #{tpu_custom_call.1} parent=0
    #allocation2 [shape = 'u8[4096]{0}', space=vmem, size = 0x1000, scoped, tag = 'input window, operand 0, single buffered']
    #allocation3 [shape = 's32[1]{0}', space=sflag, size = 0x4, scoped, tag = 'scoped memory for tpu_custom_call.1']
    #allocation4 [shape = 's32[1]{0}', space=sflag, size = 0x4, scoped, tag = 'scoped memory for tpu_custom_call.1']
    #allocation5 [shape = 'u8[32768]{0}', space=vmem, size = 0x8000, scoped, tag = 'input window, operand 1, single buffered']
    #allocation6 [shape = 's32[1]{0}', space=sflag, size = 0x4, scoped, tag = 'scoped memory for tpu_custom_call.1']
    #allocation7 [shape = 'u8[8192]{0}', space=vmem, size = 0x2000, scoped, tag = 'output window, operand 0, single buffered']
    %8 = vsyncpa [#allocation3], 0
    %9 = vsyncpa [#allocation6], 0
    %10 = vsyncpa [#allocation4], 0
    // Predicated region
    $region2: #{tpu_custom_call.1} parent=1 // pred_check
      _
    $region3: #{tpu_custom_call.1} parent=1 // pred_check_branch
      %12 = sbr.rel (0) target = $region5
    $region4: #{tpu_custom_call.1} parent=1 // pred_region
      %s14 = ssub.s32 128, 128
      %15 = vsyncadd [#allocation3], %s14
      %s16 = sshll.u32 [#allocation2], 4
      %s17 = int_to_ptr.vmem [resolvable:$true] %s16
      %22 = dma.hbm_to_vmem [thread:$0]  %s0, 128, %s17, [#allocation3], 64, 64, 4
    $region5: #{tpu_custom_call.1} parent=1 // pred_fallthru
      _
    // Predicated region
    $region6: #{tpu_custom_call.1} parent=1 // pred_check
      _
    $region7: #{tpu_custom_call.1} parent=1 // pred_check_branch
      %24 = sbr.rel (0) target = $region9
    $region8: #{tpu_custom_call.1} parent=1 // pred_region
      %s26 = ssub.s32 1024, 1024
      %27 = vsyncadd [#allocation6], %s26
      %s28 = sshll.u32 [#allocation5], 4
      %s29 = int_to_ptr.vmem [resolvable:$true] %s28
      %34 = dma.hbm_to_vmem [thread:$0]  %s1, 1024, %s29, [#allocation6], 64, 64, 4
    $region9: #{tpu_custom_call.1} parent=1 // pred_fallthru
      _
    // Predicated region
    $region10: #{tpu_custom_call.1} parent=1 // pred_check
      _
    $region11: #{tpu_custom_call.1} parent=1 // pred_check_branch
      %36 = sbr.rel (0) target = $region13
    $region12: #{tpu_custom_call.1} parent=1 // pred_region
      _
    $region13: #{tpu_custom_call.1} parent=1 // pred_fallthru
      _
    // Predicated region
    $region14: #{tpu_custom_call.1} parent=1 // pred_check
      _
    $region15: #{tpu_custom_call.1} parent=1 // pred_check_branch
      %38 = sbr.rel (0) target = $region17
    $region16: #{tpu_custom_call.1} parent=1 // pred_region
      %39 = dma.done [#allocation3], 128
    $region17: #{tpu_custom_call.1} parent=1 // pred_fallthru
      _
    // Predicated region
    $region18: #{tpu_custom_call.1} parent=1 // pred_check
      _
    $region19: #{tpu_custom_call.1} parent=1 // pred_check_branch
      %41 = sbr.rel (0) target = $region21
    $region20: #{tpu_custom_call.1} parent=1 // pred_region
      %42 = dma.done [#allocation6], 1024
    $region21: #{tpu_custom_call.1} parent=1 // pred_fallthru
      _
    %p44 = scmp.eq.s32.totalorder 0, 0
    %v45 = vld [vmem:[#allocation2] sm:$0xf]
    %v46 = vld [vmem:[#allocation2 + $0x4] sm:$0xf]
    %v47 = vld [vmem:[#allocation5] sm:$0xf]
    %v48 = vld [vmem:[#allocation5 + $0x4] sm:$0xf]
    %v49 = vld [vmem:[#allocation5 + $0x8] sm:$0xf]
    %v50 = vld [vmem:[#allocation5 + $0xc] sm:$0xf]
    %v51 = vld [vmem:[#allocation5 + $0x10] sm:$0xf]
    %v52 = vld [vmem:[#allocation5 + $0x14] sm:$0xf]
    %v53 = vld [vmem:[#allocation5 + $0x18] sm:$0xf]
    %v54 = vld [vmem:[#allocation5 + $0x1c] sm:$0xf]
    %v55 = vld [vmem:[#allocation5 + $0x20] sm:$0xf]
    %v56 = vld [vmem:[#allocation5 + $0x24] sm:$0xf]
    %v57 = vld [vmem:[#allocation5 + $0x28] sm:$0xf]
    %v58 = vld [vmem:[#allocation5 + $0x2c] sm:$0xf]
    %v59 = vld [vmem:[#allocation5 + $0x30] sm:$0xf]
    %v60 = vld [vmem:[#allocation5 + $0x34] sm:$0xf]
    %v61 = vld [vmem:[#allocation5 + $0x38] sm:$0xf]
    %v62 = vld [vmem:[#allocation5 + $0x3c] sm:$0xf]
    %v63 = vld [vmem:[%s2] sm:$0x1]
    %s64 = scalar_select %p44, 1, 0
    %v65 = vstv %s64
    %vm66 = vcmp.eq.s32.totalorder %v65, 1
    %v67 = vsel %vm66, %v63, 0.0
    %v69 = vlaneseq
    %v70 = vshrl.u32 %v69, 7
    %v71 = vsub.s32 0, %v70
    %v72 = vrot.slane %v67, %v71
    %v76 = vunpack.c.l.b16 %v45
    %v77 = vunpack.c.l.b16 %v46
    %v78 = vpack.c.b16 %v77, %v76
    %v96 = vunpack.c.l.b16 %v47
    %v97 = vunpack.c.l.b16 %v48
    %v98 = vunpack.c.l.b16 %v49
    %v99 = vunpack.c.l.b16 %v50
    %v100 = vunpack.c.l.b16 %v51
    %v101 = vunpack.c.l.b16 %v52
    %v102 = vunpack.c.l.b16 %v53
    %v103 = vunpack.c.l.b16 %v54
    %v104 = vunpack.c.l.b16 %v55
    %v105 = vunpack.c.l.b16 %v56
    %v106 = vunpack.c.l.b16 %v57
    %v107 = vunpack.c.l.b16 %v58
    %v108 = vunpack.c.l.b16 %v59
    %v109 = vunpack.c.l.b16 %v60
    %v110 = vunpack.c.l.b16 %v61
    %v111 = vunpack.c.l.b16 %v62
    %v112 = vpack.c.b16 %v97, %v96
    %v113 = vpack.c.b16 %v99, %v98
    %v114 = vpack.c.b16 %v101, %v100
    %v115 = vpack.c.b16 %v103, %v102
    %v116 = vpack.c.b16 %v105, %v104
    %v117 = vpack.c.b16 %v107, %v106
    %v118 = vpack.c.b16 %v109, %v108
    %v119 = vpack.c.b16 %v111, %v110
    %128 = vmatprep.subr.bf16.mxu0 0
    %129 = vmatpush1.bf16.msra.mxu0 %v112
    %130 = vmatprep.subr.bf16.mxu0 0
    %131 = vmatpush1.bf16.msra.mxu0 %v113
    %132 = vmatprep.subr.bf16.mxu0 0
    %133 = vmatpush1.bf16.msra.mxu0 %v114
    %134 = vmatprep.subr.bf16.mxu0 0
    %135 = vmatpush1.bf16.msra.mxu0 %v115
    %136 = vmatprep.subr.bf16.mxu0 0
    %137 = vmatpush1.bf16.msra.mxu0 %v116
    %138 = vmatprep.subr.bf16.mxu0 0
    %139 = vmatpush1.bf16.msra.mxu0 %v117
    %140 = vmatprep.subr.bf16.mxu0 0
    %141 = vmatpush1.bf16.msra.mxu0 %v118
    %142 = vmatprep.subr.bf16.mxu0 0
    %143 = vmatpush1.bf16.msra.mxu0 %v119
    %144 = vmatprep.subr.bf16.mxu0 0
    %145 = vmatpush1.bf16.msra.mxu0 0
    %146 = vmatprep.subr.bf16.mxu0 0
    %147 = vmatpush1.bf16.msra.mxu0 0
    %148 = vmatprep.subr.bf16.mxu0 0
    %149 = vmatpush1.bf16.msra.mxu0 0
    %150 = vmatprep.subr.bf16.mxu0 0
    %151 = vmatpush1.bf16.msra.mxu0 0
    %152 = vmatprep.subr.bf16.mxu0 0
    %153 = vmatpush1.bf16.msra.mxu0 0
    %154 = vmatprep.subr.bf16.mxu0 0
    %155 = vmatpush1.bf16.msra.mxu0 0
    %156 = vmatprep.subr.bf16.mxu0 0
    %157 = vmatpush1.bf16.msra.mxu0 0
    %158 = vmatprep.subr.bf16.mxu0 0
    %159 = vmatpush1.bf16.msra.mxu0 0
    %160 = vmatprep.mubr.bf16.mxu0 0
    %161 = vmatmul.mubr.bf16.gmra.mrb[0].mxu0 %v78
    %v162 = vpop.f32.mrb[0].mxu0
    %v163 = vadd.f32 %v72, %v162
    %v164 = vpop.f32.mrb[0].mxu0
    %v165 = vpop.f32.mrb[0].mxu0
    %v166 = vadd.f32 %v72, %v165
    %v167 = vpop.f32.mrb[0].mxu0
    %168 = vdwg.mxu0
    // Predicated region
    $region22: #{tpu_custom_call.1} parent=1 // pred_check
      %p169 = pneg %p44
    $region23: #{tpu_custom_call.1} parent=1 // pred_check_branch
      %171 = sbr.rel (%p169) target = $region25
    $region24: #{tpu_custom_call.1} parent=1 // pred_region
      %172 = vst [vmem:[#allocation7] sm:$0xff] %v163
      %173 = vst [vmem:[#allocation7 + $0x8] sm:$0xff] %v166
    $region25: #{tpu_custom_call.1} parent=1 // pred_fallthru
      _
    %p174 = scmp.gt.s32.totalorder 0, 0
    // Predicated region
    $region26: #{tpu_custom_call.1} parent=1 // pred_check
      %p175 = pneg %p174
    $region27: #{tpu_custom_call.1} parent=1 // pred_check_branch
      %177 = sbr.rel (%p175) target = $region29
    $region28: #{tpu_custom_call.1} parent=1 // pred_region
      %v178 = vld [vmem:[#allocation7] sm:$0xff]
      %v179 = vld [vmem:[#allocation7 + $0x8] sm:$0xff]
      %v180 = vadd.f32 %v178, %v163
      %v181 = vadd.f32 %v179, %v166
      %182 = vst [vmem:[#allocation7] sm:$0xff] %v180
      %183 = vst [vmem:[#allocation7 + $0x8] sm:$0xff] %v181
    $region29: #{tpu_custom_call.1} parent=1 // pred_fallthru
      _
    // Predicated region
    $region30: #{tpu_custom_call.1} parent=1 // pred_check
      _
    $region31: #{tpu_custom_call.1} parent=1 // pred_check_branch
      %185 = sbr.rel (0) target = $region33
    $region32: #{tpu_custom_call.1} parent=1 // pred_region
      %s187 = ssub.s32 256, 256
      %188 = vsyncadd [#allocation4], %s187
      %s189 = sshll.u32 [#allocation7], 4
      %s190 = int_to_ptr.vmem [resolvable:$true] %s189
      %195 = dma.vmem_to_hbm [thread:$0]  %s190, 256, %s3, [#allocation4], 128, 128, 8
    $region33: #{tpu_custom_call.1} parent=1 // pred_fallthru
      _
    // Predicated region
    $region34: #{tpu_custom_call.1} parent=1 // pred_check
      _
    $region35: #{tpu_custom_call.1} parent=1 // pred_check_branch
      %197 = sbr.rel (0) target = $region37
    $region36: #{tpu_custom_call.1} parent=1 // pred_region
      %198 = dma.done [#allocation4], 256
    $region37: #{tpu_custom_call.1} parent=1 // pred_fallthru
      _
    %199 = vsyncpa [#allocation3], 1
    %200 = vsyncpa [#allocation6], 1
    %201 = vsyncpa [#allocation4], 1

</llo_original>
